<compile_context>
chip_gen: v6e
topology: v6e:2x2x1
jax: 0.10.0
libtpu: 0.0.40
codegen_flags: <defaults>
</compile_context>

<pallas_src>
import functools

import numpy as np
import jax
import jax.numpy as jnp
from jax.experimental import pallas as pl
from jax.experimental.pallas import tpu as pltpu


def _round_up(v, m):
    return ((v + m - 1) // m) * m


def _select_tiles(M, K, N_pad, x_bytes, w_bytes, budget):
    """Pick (tm, tn, tk) under a VMEM budget; shrink tn/tk before tm."""
    tn_cands = [c for c in (1024, 512, 256, 128) if N_pad % c == 0] or [N_pad]
    if K % 128 == 0:
        tk_cands = [c for c in (1024, 512, 256, 128) if K % c == 0] or [K]
    else:
        tk_cands = [K]                       # unaligned K: single full-K step

    m_cap = max(8, _round_up(M, 8))
    tm_cands = []
    for c in (1024, 512, 256, 128, 64, 32, 16, 8):
        t = min(c, m_cap)
        if t not in tm_cands:
            tm_cands.append(t)

    def needed(tm, tn, tk):
        return (2 * tm * tk * x_bytes        # double-buffered x tile
                + 3 * tk * tn * w_bytes      # (up to triple-)buffered W tile
                + 2 * tm * tn * 4            # f32 output tile (+ writeback buf)
                + tm * tn * 4                # f32 accumulator (worst case)
                + 2 * tn * 4)                # bias row

    # Prefer large tm; within a tm prefer large tn, then large tk.  Only if no
    # (tn, tk) combination fits do we reduce tm (avoids tiny-row MXU shapes).
    for tm in tm_cands:
        for tn in tn_cands:
            for tk in tk_cands:
                n = needed(tm, tn, tk)
                if n <= budget:
                    return tm, tn, tk, n
    tm, tn, tk = tm_cands[-1], tn_cands[-1], tk_cands[-1]
    return tm, tn, tk, needed(tm, tn, tk)


def _make_linear_kernel(has_bias, acc_in_output):
    """Build the matmul kernel body.

    acc_in_output=True (f32 output): the resident output tile is the
    accumulator (no scratch), bias fused into the first K step.
    """
    if acc_in_output:
        def kernel(*refs):
            if has_bias:
                x_ref, w_ref, b_ref, o_ref = refs
            else:
                x_ref, w_ref, o_ref = refs
            k = pl.program_id(2)
            # In-kernel cast to the MXU compute dtype (e.g. bf16 weights).
            p = jnp.dot(x_ref[...].astype(w_ref.dtype), w_ref[...],
                        preferred_element_type=jnp.float32)

            @pl.when(k == 0)
            def _():
                o_ref[...] = (p + b_ref[...]) if has_bias else p

            @pl.when(k > 0)
            def _():
                o_ref[...] += p
    else:
        def kernel(*refs):
            if has_bias:
                x_ref, w_ref, b_ref, o_ref, acc_ref = refs
            else:
                x_ref, w_ref, o_ref, acc_ref = refs
            k = pl.program_id(2)
            p = jnp.dot(x_ref[...].astype(w_ref.dtype), w_ref[...],
                        preferred_element_type=jnp.float32)

            @pl.when(k == 0)
            def _():
                acc_ref[...] = p

            @pl.when(k > 0)
            def _():
                acc_ref[...] += p

            @pl.when(k == pl.num_programs(2) - 1)
            def _():
                r = acc_ref[...]
                if has_bias:
                    r = r + b_ref[...]
                o_ref[...] = r.astype(o_ref.dtype)
    return kernel


@functools.partial(jax.jit,
                   static_argnames=("dim_out", "out_dtype", "slice_output"))
def linear_pallas(x, w_t, bias=None, *, dim_out, out_dtype=jnp.float32,
                  slice_output=True):
    """y = x @ w_t (+ bias); optionally slice back to [:, :dim_out].

    x:    [M, K]            (any float dtype; cast to w_t.dtype inside the kernel)
    w_t:  [K, N_pad]        pre-transposed weight, N_pad a multiple of 128
    bias: [1, N_pad] f32 or None
    """
    M, K = x.shape
    K_w, N_pad = w_t.shape
    assert K_w == K, "weight / input feature-dim mismatch"
    assert N_pad % 128 == 0, "weight must be pre-padded to a multiple of 128 lanes"

    x_bytes = np.dtype(x.dtype).itemsize
    w_bytes = np.dtype(w_t.dtype).itemsize
    o_bytes = np.dtype(out_dtype).itemsize

    # Generation-aware VMEM budget (v5e/v6e: 128 MiB, v7x: 64 MiB physical).
    try:
        vmem_cap = int(pltpu.get_tpu_info().vmem_capacity_bytes)
    except Exception:
        vmem_cap = 64 * 1024 * 1024
    tile_budget = int(vmem_cap * 0.45)

    tm, tn, tk, vmem_needed = _select_tiles(M, K, N_pad, x_bytes, w_bytes,
                                            tile_budget)

    # v7x has 2 TensorCores: make sure the "parallel" row axis has >= 2 tiles
    # when there are enough rows to split (harmless on 1-TC v5e/v6e).
    if M >= 256 and pl.cdiv(M, tm) < 2:
        tm = max(128, _round_up(pl.cdiv(M, 2), 8))

    n_k = pl.cdiv(K, tk)
    grid = (pl.cdiv(M, tm), N_pad // tn, n_k)

    has_bias = bias is not None
    acc_in_output = np.dtype(out_dtype) == np.dtype(np.float32)
    kernel = _make_linear_kernel(has_bias, acc_in_output)

    x_spec = pl.BlockSpec((tm, tk), lambda i, j, k: (i, k))
    w_idx = lambda i, j, k: (k, j)
    if n_k >= 4 and tk <= 256:
        # Long K grid with small tk: deepen W buffering to hide DMA latency.
        try:
            w_spec = pl.BlockSpec((tk, tn), w_idx, pipeline_mode=pl.Buffered(3))
        except TypeError:
            w_spec = pl.BlockSpec((tk, tn), w_idx)
    else:
        w_spec = pl.BlockSpec((tk, tn), w_idx)
    o_spec = pl.BlockSpec((tm, tn), lambda i, j, k: (i, j))

    in_specs = [x_spec, w_spec]
    operands = [x, w_t]
    if has_bias:
        in_specs.append(pl.BlockSpec((1, tn), lambda i, j, k: (0, j)))
        operands.append(bias)

    scratch = [] if acc_in_output else [pltpu.VMEM((tm, tn), jnp.float32)]

    cost = pl.CostEstimate(
        flops=2 * M * K * N_pad,
        transcendentals=0,
        bytes_accessed=(M * K * x_bytes + K * N_pad * w_bytes
                        + M * N_pad * o_bytes))

    # Need-based scoped-VMEM limit with margin, capped below physical VMEM.
    vmem_limit = int(min(vmem_cap - (4 << 20),
                         max(2 * vmem_needed, 32 << 20)))

    out = pl.pallas_call(
        kernel,
        out_shape=jax.ShapeDtypeStruct((M, N_pad), out_dtype),
        grid_spec=pltpu.PrefetchScalarGridSpec(
            num_scalar_prefetch=0, grid=grid,
            in_specs=in_specs, out_specs=o_spec,
            scratch_shapes=scratch),
        compiler_params=pltpu.CompilerParams(
            dimension_semantics=("parallel", "parallel", "arbitrary"),
            vmem_limit_bytes=vmem_limit),
        cost_estimate=cost,
    )(*operands)

    if slice_output and N_pad != dim_out:
        out = out[:, :dim_out]
    return out


class LinearGraphGym:
    """Mirror of graphgym `Linear`: holds W/b, applies y = x W^T + b to batch.x.

    compute_dtype=jnp.bfloat16 is recommended on v6e/v7x: W is stored in bf16
    and x is cast in-kernel; accumulation and bias stay in f32.
    slice_output=False keeps the lane-padded (multiple-of-128) output, letting
    it flow into the next layer without an extra HBM slice copy.
    """

    def __init__(self, dim_in, dim_out, has_bias=True, key=None,
                 compute_dtype=None, slice_output=True):
        key = jax.random.PRNGKey(0) if key is None else key
        kw, kb = jax.random.split(key)
        limit = (6.0 / (dim_in + dim_out)) ** 0.5
        # PyTorch nn.Linear convention: weight is [dim_out, dim_in].
        self.weight = jax.random.uniform(kw, (dim_out, dim_in), jnp.float32,
                                         -limit, limit)
        self.bias = (jax.random.uniform(kb, (dim_out,), jnp.float32, -limit, limit)
                     if has_bias else None)
        self.dim_in, self.dim_out = dim_in, dim_out
        self.slice_output = slice_output

        # One-time parameter glue (hoisted out of the forward path):
        #   pre-transpose to [dim_in, dim_out], zero-pad dim_out to a multiple
        #   of 128 (lane-dense output), optionally store W in bf16.
        n_pad = _round_up(dim_out, 128)
        w_dtype = compute_dtype if compute_dtype is not None else jnp.float32
        w_t = jnp.zeros((dim_in, n_pad), dtype=w_dtype)
        self._w_t = w_t.at[:, :dim_out].set(self.weight.T.astype(w_dtype))
        if self.bias is not None:
            b = jnp.zeros((1, n_pad), dtype=jnp.float32)
            self._b = b.at[:, :dim_out].set(self.bias[None, :])
        else:
            self._b = None

    def _apply(self, x):
        # No wrapper-side cast: x is cast to the MXU compute dtype inside the
        # kernel, saving a full HBM read+write of x.
        return linear_pallas(x, self._w_t, self._b, dim_out=self.dim_out,
                             out_dtype=x.dtype, slice_output=self.slice_output)

    def __call__(self, batch):
        if isinstance(batch, jax.Array):
            return self._apply(batch)
        batch.x = self._apply(batch.x)   # graphgym batch-like object
        return batch


if __name__ == "__main__":
    key = jax.random.PRNGKey(0)
    k_x, k_p = jax.random.split(key)

    # Small shapes consistent with a graphgym node-feature matrix; node count
    # deliberately NOT a multiple of 8/128 to exercise the ragged row path.
    num_nodes, dim_in, dim_out = 250, 64, 32
    x = jax.random.normal(k_x, (num_nodes, dim_in), jnp.float32)

    # f32 path (tight check, bias).
    layer = LinearGraphGym(dim_in, dim_out, has_bias=True, key=k_p)
    y = jax.block_until_ready(layer(x))
    y_ref = x @ layer.weight.T + layer.bias
    assert y.shape == (num_nodes, dim_out)
    assert jnp.allclose(y, y_ref, atol=1e-5, rtol=1e-5)

    # bias-free path (separate kernel variant, no fake zero bias).
    layer_nb = LinearGraphGym(dim_in, dim_out, has_bias=False, key=k_p)
    y_nb = jax.block_until_ready(layer_nb(x))
    assert jnp.allclose(y_nb, x @ layer_nb.weight.T, atol=1e-5, rtol=1e-5)

    # padded (lane-dense) output path: no trailing slice, first dim_out cols match.
    layer_pad = LinearGraphGym(dim_in, dim_out, has_bias=True, key=k_p,
                               slice_output=False)
    y_pad = jax.block_until_ready(layer_pad(x))
    assert y_pad.shape[1] % 128 == 0
    assert jnp.allclose(y_pad[:, :dim_out], y_ref, atol=1e-5, rtol=1e-5)

    # bf16 MXU operands (recommended on v6e/v7x): W stored in bf16, x cast
    # in-kernel, f32 accumulate + f32 bias, f32 output.
    layer_bf16 = LinearGraphGym(dim_in, dim_out, has_bias=True, key=k_p,
                                compute_dtype=jnp.bfloat16)
    y_bf16 = jax.block_until_ready(layer_bf16(x))
    assert y_bf16.dtype == jnp.float32
    assert jnp.allclose(y_bf16, y_ref, atol=1e-1, rtol=1e-1)

    print("KERNEL_OK")
</pallas_src>

<mosaic_0001>
module attributes {stable_mosaic.version = 11 : i64} {
  func.func @kernel(%arg0: i32, %arg1: i32, %arg2: i32, %arg3: memref<256x64xf32, #tpu.memory_space<vmem>>, %arg4: memref<64x128xf32, #tpu.memory_space<vmem>>, %arg5: memref<1x128xf32, #tpu.memory_space<vmem>>, %arg6: memref<256x128xf32, #tpu.memory_space<vmem>>) attributes {dimension_semantics = [#tpu.dimension_semantics<parallel>, #tpu.dimension_semantics<parallel>, #tpu.dimension_semantics<arbitrary>], iteration_bounds = array<i64: 1, 1, 1>, scalar_prefetch = 0 : i64, scratch_operands = 0 : i64, tpu.core_type = #tpu.core_type<tc>, window_params = [{transform_indices = @transform_0, window_bounds = array<i64: 256, 64>}, {transform_indices = @transform_1, window_bounds = array<i64: 64, 128>}, {transform_indices = @transform_2, window_bounds = array<i64: 1, 128>}, {transform_indices = @transform_3, window_bounds = array<i64: 256, 128>}]} {
    %c0 = arith.constant 0 : index
    %c0_0 = arith.constant 0 : index
    %0 = vector.load %arg3[%c0, %c0_0] : memref<256x64xf32, #tpu.memory_space<vmem>>, vector<256x64xf32>
    %c0_1 = arith.constant 0 : index
    %c0_2 = arith.constant 0 : index
    %1 = vector.load %arg4[%c0_1, %c0_2] : memref<64x128xf32, #tpu.memory_space<vmem>>, vector<64x128xf32>
    %cst = arith.constant dense<0.000000e+00> : vector<256x128xf32>
    %2 = tpu.matmul %0, %1, %cst {dimension_numbers = #tpu.dot_dimension_numbers<[1], [0], [0], [1], [0, 0, 1, 1], [], []>} : vector<256x64xf32>, vector<64x128xf32>, vector<256x128xf32> -> vector<256x128xf32>
    %c0_i32 = arith.constant 0 : i32
    %3 = arith.cmpi eq, %arg2, %c0_i32 : i32
    %4 = arith.extui %3 : i1 to i32
    %c0_i32_3 = arith.constant 0 : i32
    %5 = arith.cmpi ne, %4, %c0_i32_3 : i32
    scf.if %5 {
      %c0_6 = arith.constant 0 : index
      %c0_7 = arith.constant 0 : index
      %9 = vector.load %arg5[%c0_6, %c0_7] : memref<1x128xf32, #tpu.memory_space<vmem>>, vector<1x128xf32>
      %10 = vector.broadcast %9 : vector<1x128xf32> to vector<256x128xf32>
      %11 = arith.addf %2, %10 : vector<256x128xf32>
      %c0_8 = arith.constant 0 : index
      %c0_9 = arith.constant 0 : index
      %12 = vector.load %arg6[%c0_8, %c0_9] : memref<256x128xf32, #tpu.memory_space<vmem>>, vector<256x128xf32>
      tpu.vector_store %arg6[%c0_8, %c0_9], %11 {strides = array<i32>} : memref<256x128xf32, #tpu.memory_space<vmem>>, vector<256x128xf32>,
    } else {
    }
    %c0_i32_4 = arith.constant 0 : i32
    %6 = arith.cmpi sgt, %arg2, %c0_i32_4 : i32
    %7 = arith.extui %6 : i1 to i32
    %c0_i32_5 = arith.constant 0 : i32
    %8 = arith.cmpi ne, %7, %c0_i32_5 : i32
    scf.if %8 {
      %c0_6 = arith.constant 0 : index
      %c0_7 = arith.constant 0 : index
      %9 = vector.load %arg6[%c0_6, %c0_7] : memref<256x128xf32, #tpu.memory_space<vmem>>, vector<256x128xf32>
      %10 = arith.addf %9, %2 : vector<256x128xf32>
      %c0_8 = arith.constant 0 : index
      %c0_9 = arith.constant 0 : index
      %11 = vector.load %arg6[%c0_8, %c0_9] : memref<256x128xf32, #tpu.memory_space<vmem>>, vector<256x128xf32>
      tpu.vector_store %arg6[%c0_8, %c0_9], %10 {strides = array<i32>} : memref<256x128xf32, #tpu.memory_space<vmem>>, vector<256x128xf32>,
    } else {
    }
    return
  }
  func.func @transform_0(%arg0: i32, %arg1: i32, %arg2: i32) -> (i32, i32) {
    %c0_i32 = arith.constant 0 : i32
    return %arg0, %arg2 : i32, i32
  }
  func.func @transform_1(%arg0: i32, %arg1: i32, %arg2: i32) -> (i32, i32) {
    %c0_i32 = arith.constant 0 : i32
    return %arg2, %arg1 : i32, i32
  }
  func.func @transform_2(%arg0: i32, %arg1: i32, %arg2: i32) -> (i32, i32) {
    %c0_i32 = arith.constant 0 : i32
    %c0_i32_0 = arith.constant 0 : i32
    return %c0_i32, %arg1 : i32, i32
  }
  func.func @transform_3(%arg0: i32, %arg1: i32, %arg2: i32) -> (i32, i32) {
    %c0_i32 = arith.constant 0 : i32
    return %arg0, %arg1 : i32, i32
  }
}

</mosaic_0001>

<llo_original>
// kernel: linear_pallas.1
$region0: #{linear_pallas.1}
  #allocation0 [shape = 'u32[]', space=smem, size = 0x4, offset = 0x4, fixed_abs, tag = 'smem constant byte address 0x4 - core index']
  #allocation1 [shape = 'u32[144,128]{1,0:T(1,128)}', space=vmem, size = 0x12000, scoped, tag = 'internal scratch']
  %s0 = inlined_call_operand.vmem [shape: f32[250,64], index: 0, kind: input, shape index: {}]
  %s1 = inlined_call_operand.vmem [shape: f32[64,128], index: 1, kind: input, shape index: {}]
  %s2 = inlined_call_operand.vmem [shape: f32[1,128], index: 2, kind: input, shape index: {}]
  %s3 = inlined_call_operand.vmem [shape: f32[250,128], index: 3, kind: output, shape index: {}]
  %s4 = sld [smem:[#allocation0]]
  $region30: #{linear_pallas.1} parent=0
    _
  %s6 = ssub.s32 1, %s4
  %s7 = scalar_select 0, %s6, %s4
  // Predicated region
  $region2: #{linear_pallas.1} parent=0 // pred_check
    _
  $region3: #{linear_pallas.1} parent=0 // pred_check_branch
    %9 = sbr.rel (0) target = $region5
  $region4: #{linear_pallas.1} parent=0 // pred_region
    _
  $region5: #{linear_pallas.1} parent=0 // pred_fallthru
    _
  // Predicated region
  $region6: #{linear_pallas.1} parent=0 // pred_check
    _
  $region7: #{linear_pallas.1} parent=0 // pred_check_branch
    %11 = sbr.rel (0) target = $region9
  $region8: #{linear_pallas.1} parent=0 // pred_region
    _
  $region9: #{linear_pallas.1} parent=0 // pred_fallthru
    _
  // Predicated region
  $region10: #{linear_pallas.1} parent=0 // pred_check
    _
  $region11: #{linear_pallas.1} parent=0 // pred_check_branch
    %13 = sbr.rel (0) target = $region13
  $region12: #{linear_pallas.1} parent=0 // pred_region
    _
  $region13: #{linear_pallas.1} parent=0 // pred_fallthru
    _
  %v14 = vld [vmem:[%s0] sm:$0xff]
  %v15 = vld [vmem:[%s0 + $0x8] sm:$0xff]
  %v16 = vld [vmem:[%s0 + $0x10] sm:$0xff]
  %v17 = vld [vmem:[%s0 + $0x18] sm:$0xff]
  %v18 = vld [vmem:[%s0 + $0x20] sm:$0xff]
  %v19 = vld [vmem:[%s0 + $0x28] sm:$0xff]
  %v20 = vld [vmem:[%s0 + $0x30] sm:$0xff]
  %v21 = vld [vmem:[%s0 + $0x38] sm:$0xff]
  %v22 = vld [vmem:[%s0 + $0x40] sm:$0xff]
  %v23 = vld [vmem:[%s0 + $0x48] sm:$0xff]
  %v24 = vld [vmem:[%s0 + $0x50] sm:$0xff]
  %v25 = vld [vmem:[%s0 + $0x58] sm:$0xff]
  %v26 = vld [vmem:[%s0 + $0x60] sm:$0xff]
  %v27 = vld [vmem:[%s0 + $0x68] sm:$0xff]
  %v28 = vld [vmem:[%s0 + $0x70] sm:$0xff]
  %v29 = vld [vmem:[%s0 + $0x78] sm:$0xff]
  %v30 = vld [vmem:[%s0 + $0x80] sm:$0xff]
  %v31 = vld [vmem:[%s0 + $0x88] sm:$0xff]
  %v32 = vld [vmem:[%s0 + $0x90] sm:$0xff]
  %v33 = vld [vmem:[%s0 + $0x98] sm:$0xff]
  %v34 = vld [vmem:[%s0 + $0xa0] sm:$0xff]
  %v35 = vld [vmem:[%s0 + $0xa8] sm:$0xff]
  %v36 = vld [vmem:[%s0 + $0xb0] sm:$0xff]
  %v37 = vld [vmem:[%s0 + $0xb8] sm:$0xff]
  %v38 = vld [vmem:[%s0 + $0xc0] sm:$0xff]
  %v39 = vld [vmem:[%s0 + $0xc8] sm:$0xff]
  %v40 = vld [vmem:[%s0 + $0xd0] sm:$0xff]
  %v41 = vld [vmem:[%s0 + $0xd8] sm:$0xff]
  %v42 = vld [vmem:[%s0 + $0xe0] sm:$0xff]
  %v43 = vld [vmem:[%s0 + $0xe8] sm:$0xff]
  %v44 = vld [vmem:[%s0 + $0xf0] sm:$0xff]
  %v45 = vld [vmem:[%s0 + $0xf8] sm:$0xff]
  %v46 = vld [vmem:[%s1] sm:$0xff]
  %v47 = vld [vmem:[%s1 + $0x8] sm:$0xff]
  %v48 = vld [vmem:[%s1 + $0x10] sm:$0xff]
  %v49 = vld [vmem:[%s1 + $0x18] sm:$0xff]
  %v50 = vld [vmem:[%s1 + $0x20] sm:$0xff]
  %v51 = vld [vmem:[%s1 + $0x28] sm:$0xff]
  %v52 = vld [vmem:[%s1 + $0x30] sm:$0xff]
  %v53 = vld [vmem:[%s1 + $0x38] sm:$0xff]
  %vm54 = vcmask 523264
  %v56 = vsel %vm54, %v14, 0
  %v59 = vsel %vm54, %v15, 0
  %v62 = vsel %vm54, %v16, 0
  %v65 = vsel %vm54, %v17, 0
  %v68 = vsel %vm54, %v18, 0
  %v71 = vsel %vm54, %v19, 0
  %v74 = vsel %vm54, %v20, 0
  %v77 = vsel %vm54, %v21, 0
  %v80 = vsel %vm54, %v22, 0
  %v83 = vsel %vm54, %v23, 0
  %v86 = vsel %vm54, %v24, 0
  %v89 = vsel %vm54, %v25, 0
  %v92 = vsel %vm54, %v26, 0
  %v95 = vsel %vm54, %v27, 0
  %v98 = vsel %vm54, %v28, 0
  %v101 = vsel %vm54, %v29, 0
  %v104 = vsel %vm54, %v30, 0
  %v107 = vsel %vm54, %v31, 0
  %v110 = vsel %vm54, %v32, 0
  %v113 = vsel %vm54, %v33, 0
  %v116 = vsel %vm54, %v34, 0
  %v119 = vsel %vm54, %v35, 0
  %v122 = vsel %vm54, %v36, 0
  %v125 = vsel %vm54, %v37, 0
  %v128 = vsel %vm54, %v38, 0
  %v131 = vsel %vm54, %v39, 0
  %v134 = vsel %vm54, %v40, 0
  %v137 = vsel %vm54, %v41, 0
  %v140 = vsel %vm54, %v42, 0
  %v143 = vsel %vm54, %v43, 0
  %v146 = vsel %vm54, %v44, 0
  %v149 = vsel %vm54, %v45, 0
  %151 = vmatprep.subr.mxu0 0.0
  %152 = vmatpush1.msra.mxu0 0.0
  %153 = vmatprep.subr.mxu0 0.0
  %154 = vmatpush1.msra.mxu0 0.0
  %155 = vmatprep.subr.mxu0 0.0
  %156 = vmatpush1.msra.mxu0 0.0
  %157 = vmatprep.subr.mxu0 0.0
  %158 = vmatpush1.msra.mxu0 0.0
  %159 = vmatprep.subr.mxu0 0.0
  %160 = vmatpush1.msra.mxu0 0.0
  %161 = vmatprep.subr.mxu0 0.0
  %162 = vmatpush1.msra.mxu0 0.0
  %163 = vmatprep.subr.mxu0 0.0
  %164 = vmatpush1.msra.mxu0 0.0
  %165 = vmatprep.subr.mxu0 0.0
  %166 = vmatpush1.msra.mxu0 0.0
  %167 = vmatprep.subr.mxu0 0.0
  %168 = vmatpush1.msra.mxu0 %v53
  %169 = vmatprep.subr.mxu0 0.0
  %170 = vmatpush1.msra.mxu0 %v52
  %171 = vmatprep.subr.mxu0 0.0
  %172 = vmatpush1.msra.mxu0 %v51
  %173 = vmatprep.subr.mxu0 0.0
  %174 = vmatpush1.msra.mxu0 %v50
  %175 = vmatprep.subr.mxu0 0.0
  %176 = vmatpush1.msra.mxu0 %v49
  %177 = vmatprep.subr.mxu0 0.0
  %178 = vmatpush1.msra.mxu0 %v48
  %179 = vmatprep.subr.mxu0 0.0
  %180 = vmatpush1.msra.mxu0 %v47
  %181 = vmatprep.subr.mxu0 0.0
  %182 = vmatpush1.msra.mxu0 %v46
  %183 = vmatprep.subr.mxu0 0.0
  %184 = vmatpush2.msra.mxu0 0.0
  %185 = vmatprep.subr.mxu0 0.0
  %186 = vmatpush2.msra.mxu0 0.0
  %187 = vmatprep.subr.mxu0 0.0
  %188 = vmatpush2.msra.mxu0 0.0
  %189 = vmatprep.subr.mxu0 0.0
  %190 = vmatpush2.msra.mxu0 0.0
  %191 = vmatprep.subr.mxu0 0.0
  %192 = vmatpush2.msra.mxu0 0.0
  %193 = vmatprep.subr.mxu0 0.0
  %194 = vmatpush2.msra.mxu0 0.0
  %195 = vmatprep.subr.mxu0 0.0
  %196 = vmatpush2.msra.mxu0 0.0
  %197 = vmatprep.subr.mxu0 0.0
  %198 = vmatpush2.msra.mxu0 0.0
  %199 = vmatprep.subr.mxu0 0.0
  %200 = vmatpush2.msra.mxu0 0.0
  %201 = vmatprep.subr.mxu0 0.0
  %202 = vmatpush2.msra.mxu0 0.0
  %203 = vmatprep.subr.mxu0 0.0
  %204 = vmatpush2.msra.mxu0 0.0
  %205 = vmatprep.subr.mxu0 0.0
  %206 = vmatpush2.msra.mxu0 0.0
  %207 = vmatprep.subr.mxu0 0.0
  %208 = vmatpush2.msra.mxu0 0.0
  %209 = vmatprep.subr.mxu0 0.0
  %210 = vmatpush2.msra.mxu0 0.0
  %211 = vmatprep.subr.mxu0 0.0
  %212 = vmatpush2.msra.mxu0 0.0
  %213 = vmatprep.subr.mxu0 0.0
  %214 = vmatpush2.msra.mxu0 0.0
  %215 = vmatprep.mubr.f32.mxu0 0.0
  %216 = vmatmul.mubr.f32.gmra.mxu0 %v56
  %v217 = vpop.f32.mrf.mxu0
  %v218 = vadd.f32 0.0, %v217
  %v219 = vpop.f32.mrf.mxu0
  %220 = vmatprep.mubr.f32.mxu0 0.0
  %221 = vmatmul.mubr.f32.gmra.mxu0 %v59
  %v222 = vpop.f32.mrf.mxu0
  %v223 = vadd.f32 0.0, %v222
  %v224 = vpop.f32.mrf.mxu0
  %225 = vmatprep.mubr.f32.mxu0 0.0
  %226 = vmatmul.mubr.f32.gmra.mxu0 %v62
  %v227 = vpop.f32.mrf.mxu0
  %v228 = vadd.f32 0.0, %v227
  %v229 = vpop.f32.mrf.mxu0
  %230 = vmatprep.mubr.f32.mxu0 0.0
  %231 = vmatmul.mubr.f32.gmra.mxu0 %v65
  %v232 = vpop.f32.mrf.mxu0
  %v233 = vadd.f32 0.0, %v232
  %v234 = vpop.f32.mrf.mxu0
  %235 = vmatprep.mubr.f32.mxu0 0.0
  %236 = vmatmul.mubr.f32.gmra.mxu0 %v68
  %v237 = vpop.f32.mrf.mxu0
  %v238 = vadd.f32 0.0, %v237
  %v239 = vpop.f32.mrf.mxu0
  %240 = vmatprep.mubr.f32.mxu0 0.0
  %241 = vmatmul.mubr.f32.gmra.mxu0 %v71
  %v242 = vpop.f32.mrf.mxu0
  %v243 = vadd.f32 0.0, %v242
  %v244 = vpop.f32.mrf.mxu0
  %245 = vmatprep.mubr.f32.mxu0 0.0
  %246 = vmatmul.mubr.f32.gmra.mxu0 %v74
  %v247 = vpop.f32.mrf.mxu0
  %v248 = vadd.f32 0.0, %v247
  %v249 = vpop.f32.mrf.mxu0
  %250 = vmatprep.mubr.f32.mxu0 0.0
  %251 = vmatmul.mubr.f32.gmra.mxu0 %v77
  %v252 = vpop.f32.mrf.mxu0
  %v253 = vadd.f32 0.0, %v252
  %v254 = vpop.f32.mrf.mxu0
  %255 = vmatprep.mubr.f32.mxu0 0.0
  %256 = vmatmul.mubr.f32.gmra.mxu0 %v80
  %v257 = vpop.f32.mrf.mxu0
  %v258 = vadd.f32 0.0, %v257
  %v259 = vpop.f32.mrf.mxu0
  %260 = vmatprep.mubr.f32.mxu0 0.0
  %261 = vmatmul.mubr.f32.gmra.mxu0 %v83
  %v262 = vpop.f32.mrf.mxu0
  %v263 = vadd.f32 0.0, %v262
  %v264 = vpop.f32.mrf.mxu0
  %265 = vmatprep.mubr.f32.mxu0 0.0
  %266 = vmatmul.mubr.f32.gmra.mxu0 %v86
  %v267 = vpop.f32.mrf.mxu0
  %v268 = vadd.f32 0.0, %v267
  %v269 = vpop.f32.mrf.mxu0
  %270 = vmatprep.mubr.f32.mxu0 0.0
  %271 = vmatmul.mubr.f32.gmra.mxu0 %v89
  %v272 = vpop.f32.mrf.mxu0
  %v273 = vadd.f32 0.0, %v272
  %v274 = vpop.f32.mrf.mxu0
  %275 = vmatprep.mubr.f32.mxu0 0.0
  %276 = vmatmul.mubr.f32.gmra.mxu0 %v92
  %v277 = vpop.f32.mrf.mxu0
  %v278 = vadd.f32 0.0, %v277
  %v279 = vpop.f32.mrf.mxu0
  %280 = vmatprep.mubr.f32.mxu0 0.0
  %281 = vmatmul.mubr.f32.gmra.mxu0 %v95
  %v282 = vpop.f32.mrf.mxu0
  %v283 = vadd.f32 0.0, %v282
  %v284 = vpop.f32.mrf.mxu0
  %285 = vmatprep.mubr.f32.mxu0 0.0
  %286 = vmatmul.mubr.f32.gmra.mxu0 %v98
  %v287 = vpop.f32.mrf.mxu0
  %v288 = vadd.f32 0.0, %v287
  %v289 = vpop.f32.mrf.mxu0
  %290 = vmatprep.mubr.f32.mxu0 0.0
  %291 = vmatmul.mubr.f32.gmra.mxu0 %v101
  %v292 = vpop.f32.mrf.mxu0
  %v293 = vadd.f32 0.0, %v292
  %v294 = vpop.f32.mrf.mxu0
  %295 = vmatprep.mubr.f32.mxu0 0.0
  %296 = vmatmul.mubr.f32.gmra.mxu0 %v104
  %v297 = vpop.f32.mrf.mxu0
  %v298 = vadd.f32 0.0, %v297
  %v299 = vpop.f32.mrf.mxu0
  %300 = vmatprep.mubr.f32.mxu0 0.0
  %301 = vmatmul.mubr.f32.gmra.mxu0 %v107
  %v302 = vpop.f32.mrf.mxu0
  %v303 = vadd.f32 0.0, %v302
  %v304 = vpop.f32.mrf.mxu0
  %305 = vmatprep.mubr.f32.mxu0 0.0
  %306 = vmatmul.mubr.f32.gmra.mxu0 %v110
  %v307 = vpop.f32.mrf.mxu0
  %v308 = vadd.f32 0.0, %v307
  %v309 = vpop.f32.mrf.mxu0
  %310 = vmatprep.mubr.f32.mxu0 0.0
  %311 = vmatmul.mubr.f32.gmra.mxu0 %v113
  %v312 = vpop.f32.mrf.mxu0
  %v313 = vadd.f32 0.0, %v312
  %v314 = vpop.f32.mrf.mxu0
  %315 = vmatprep.mubr.f32.mxu0 0.0
  %316 = vmatmul.mubr.f32.gmra.mxu0 %v116
  %v317 = vpop.f32.mrf.mxu0
  %v318 = vadd.f32 0.0, %v317
  %v319 = vpop.f32.mrf.mxu0
  %320 = vmatprep.mubr.f32.mxu0 0.0
  %321 = vmatmul.mubr.f32.gmra.mxu0 %v119
  %v322 = vpop.f32.mrf.mxu0
  %v323 = vadd.f32 0.0, %v322
  %v324 = vpop.f32.mrf.mxu0
  %325 = vmatprep.mubr.f32.mxu0 0.0
  %326 = vmatmul.mubr.f32.gmra.mxu0 %v122
  %v327 = vpop.f32.mrf.mxu0
  %v328 = vadd.f32 0.0, %v327
  %v329 = vpop.f32.mrf.mxu0
  %330 = vmatprep.mubr.f32.mxu0 0.0
  %331 = vmatmul.mubr.f32.gmra.mxu0 %v125
  %v332 = vpop.f32.mrf.mxu0
  %v333 = vadd.f32 0.0, %v332
  %v334 = vpop.f32.mrf.mxu0
  %335 = vmatprep.mubr.f32.mxu0 0.0
  %336 = vmatmul.mubr.f32.gmra.mxu0 %v128
  %v337 = vpop.f32.mrf.mxu0
  %v338 = vadd.f32 0.0, %v337
  %v339 = vpop.f32.mrf.mxu0
  %340 = vmatprep.mubr.f32.mxu0 0.0
  %341 = vmatmul.mubr.f32.gmra.mxu0 %v131
  %v342 = vpop.f32.mrf.mxu0
  %v343 = vadd.f32 0.0, %v342
  %v344 = vpop.f32.mrf.mxu0
  %345 = vmatprep.mubr.f32.mxu0 0.0
  %346 = vmatmul.mubr.f32.gmra.mxu0 %v134
  %v347 = vpop.f32.mrf.mxu0
  %v348 = vadd.f32 0.0, %v347
  %v349 = vpop.f32.mrf.mxu0
  %350 = vmatprep.mubr.f32.mxu0 0.0
  %351 = vmatmul.mubr.f32.gmra.mxu0 %v137
  %v352 = vpop.f32.mrf.mxu0
  %v353 = vadd.f32 0.0, %v352
  %v354 = vpop.f32.mrf.mxu0
  %355 = vmatprep.mubr.f32.mxu0 0.0
  %356 = vmatmul.mubr.f32.gmra.mxu0 %v140
  %v357 = vpop.f32.mrf.mxu0
  %v358 = vadd.f32 0.0, %v357
  %v359 = vpop.f32.mrf.mxu0
  %360 = vmatprep.mubr.f32.mxu0 0.0
  %361 = vmatmul.mubr.f32.gmra.mxu0 %v143
  %v362 = vpop.f32.mrf.mxu0
  %v363 = vadd.f32 0.0, %v362
  %v364 = vpop.f32.mrf.mxu0
  %365 = vmatprep.mubr.f32.mxu0 0.0
  %366 = vmatmul.mubr.f32.gmra.mxu0 %v146
  %v367 = vpop.f32.mrf.mxu0
  %v368 = vadd.f32 0.0, %v367
  %v369 = vpop.f32.mrf.mxu0
  %370 = vmatprep.mubr.f32.mxu0 0.0
  %371 = vmatmul.mubr.f32.gmra.mxu0 %v149
  %v372 = vpop.f32.mrf.mxu0
  %v373 = vadd.f32 0.0, %v372
  %v374 = vpop.f32.mrf.mxu0
  %375 = vdwg.mxu0
  %p376 = scmp.eq.s32.totalorder 0, 0
  // Predicated region
  $region14: #{linear_pallas.1} parent=0 // pred_check
    %p377 = pneg %p376
  $region15: #{linear_pallas.1} parent=0 // pred_check_branch
    %379 = sbr.rel (%p377) target = $region17
  $region16: #{linear_pallas.1} parent=0 // pred_region
    %v380 = vld [vmem:[%s2] sm:$0x1]
    %v382 = vlaneseq
    %v383 = vshrl.u32 %v382, 7
    %v384 = vsub.s32 0, %v383
    %v385 = vrot.slane %v380, %v384
    %v387 = vadd.f32 %v218, %v385
    %v388 = vadd.f32 %v223, %v385
    %v389 = vadd.f32 %v228, %v385
    %v390 = vadd.f32 %v233, %v385
    %v391 = vadd.f32 %v238, %v385
    %v392 = vadd.f32 %v243, %v385
    %v393 = vadd.f32 %v248, %v385
    %v394 = vadd.f32 %v253, %v385
    %v395 = vadd.f32 %v258, %v385
    %v396 = vadd.f32 %v263, %v385
    %v397 = vadd.f32 %v268, %v385
    %v398 = vadd.f32 %v273, %v385
    %v399 = vadd.f32 %v278, %v385
    %v400 = vadd.f32 %v283, %v385
    %v401 = vadd.f32 %v288, %v385
    %v402 = vadd.f32 %v293, %v385
    %v403 = vadd.f32 %v298, %v385
    %v404 = vadd.f32 %v303, %v385
    %v405 = vadd.f32 %v308, %v385
    %v406 = vadd.f32 %v313, %v385
    %v407 = vadd.f32 %v318, %v385
    %v408 = vadd.f32 %v323, %v385
    %v409 = vadd.f32 %v328, %v385
    %v410 = vadd.f32 %v333, %v385
    %v411 = vadd.f32 %v338, %v385
    %v412 = vadd.f32 %v343, %v385
    %v413 = vadd.f32 %v348, %v385
    %v414 = vadd.f32 %v353, %v385
    %v415 = vadd.f32 %v358, %v385
    %v416 = vadd.f32 %v363, %v385
    %v417 = vadd.f32 %v368, %v385
    %v418 = vadd.f32 %v373, %v385
    %419 = vst [vmem:[%s3] sm:$0xff] %v387
    %420 = vst [vmem:[%s3 + $0x8] sm:$0xff] %v388
    %421 = vst [vmem:[%s3 + $0x10] sm:$0xff] %v389
    %422 = vst [vmem:[%s3 + $0x18] sm:$0xff] %v390
    %423 = vst [vmem:[%s3 + $0x20] sm:$0xff] %v391
    %424 = vst [vmem:[%s3 + $0x28] sm:$0xff] %v392
    %425 = vst [vmem:[%s3 + $0x30] sm:$0xff] %v393
    %426 = vst [vmem:[%s3 + $0x38] sm:$0xff] %v394
    %427 = vst [vmem:[%s3 + $0x40] sm:$0xff] %v395
    %428 = vst [vmem:[%s3 + $0x48] sm:$0xff] %v396
    %429 = vst [vmem:[%s3 + $0x50] sm:$0xff] %v397
    %430 = vst [vmem:[%s3 + $0x58] sm:$0xff] %v398
    %431 = vst [vmem:[%s3 + $0x60] sm:$0xff] %v399
    %432 = vst [vmem:[%s3 + $0x68] sm:$0xff] %v400
    %433 = vst [vmem:[%s3 + $0x70] sm:$0xff] %v401
    %434 = vst [vmem:[%s3 + $0x78] sm:$0xff] %v402
    %435 = vst [vmem:[%s3 + $0x80] sm:$0xff] %v403
    %436 = vst [vmem:[%s3 + $0x88] sm:$0xff] %v404
    %437 = vst [vmem:[%s3 + $0x90] sm:$0xff] %v405
    %438 = vst [vmem:[%s3 + $0x98] sm:$0xff] %v406
    %439 = vst [vmem:[%s3 + $0xa0] sm:$0xff] %v407
    %440 = vst [vmem:[%s3 + $0xa8] sm:$0xff] %v408
    %441 = vst [vmem:[%s3 + $0xb0] sm:$0xff] %v409
    %442 = vst [vmem:[%s3 + $0xb8] sm:$0xff] %v410
    %443 = vst [vmem:[%s3 + $0xc0] sm:$0xff] %v411
    %444 = vst [vmem:[%s3 + $0xc8] sm:$0xff] %v412
    %445 = vst [vmem:[%s3 + $0xd0] sm:$0xff] %v413
    %446 = vst [vmem:[%s3 + $0xd8] sm:$0xff] %v414
    %447 = vst [vmem:[%s3 + $0xe0] sm:$0xff] %v415
    %448 = vst [vmem:[%s3 + $0xe8] sm:$0xff] %v416
    %449 = vst [vmem:[%s3 + $0xf0] sm:$0xff] %v417
    %450 = vst [vmem:[%s3 + $0xf8] sm:$0xff] %v418
  $region17: #{linear_pallas.1} parent=0 // pred_fallthru
    _
  %p451 = scmp.gt.s32.totalorder 0, 0
  // Predicated region
  $region18: #{linear_pallas.1} parent=0 // pred_check
    %p452 = pneg %p451
  $region19: #{linear_pallas.1} parent=0 // pred_check_branch
    %454 = sbr.rel (%p452) target = $region21
  $region20: #{linear_pallas.1} parent=0 // pred_region
    %v455 = vld [vmem:[%s3] sm:$0xff]
    %v456 = vld [vmem:[%s3 + $0x8] sm:$0xff]
    %v457 = vld [vmem:[%s3 + $0x10] sm:$0xff]
    %v458 = vld [vmem:[%s3 + $0x18] sm:$0xff]
    %v459 = vld [vmem:[%s3 + $0x20] sm:$0xff]
    %v460 = vld [vmem:[%s3 + $0x28] sm:$0xff]
    %v461 = vld [vmem:[%s3 + $0x30] sm:$0xff]
    %v462 = vld [vmem:[%s3 + $0x38] sm:$0xff]
    %v463 = vld [vmem:[%s3 + $0x40] sm:$0xff]
    %v464 = vld [vmem:[%s3 + $0x48] sm:$0xff]
    %v465 = vld [vmem:[%s3 + $0x50] sm:$0xff]
    %v466 = vld [vmem:[%s3 + $0x58] sm:$0xff]
    %v467 = vld [vmem:[%s3 + $0x60] sm:$0xff]
    %v468 = vld [vmem:[%s3 + $0x68] sm:$0xff]
    %v469 = vld [vmem:[%s3 + $0x70] sm:$0xff]
    %v470 = vld [vmem:[%s3 + $0x78] sm:$0xff]
    %v471 = vld [vmem:[%s3 + $0x80] sm:$0xff]
    %v472 = vld [vmem:[%s3 + $0x88] sm:$0xff]
    %v473 = vld [vmem:[%s3 + $0x90] sm:$0xff]
    %v474 = vld [vmem:[%s3 + $0x98] sm:$0xff]
    %v475 = vld [vmem:[%s3 + $0xa0] sm:$0xff]
    %v476 = vld [vmem:[%s3 + $0xa8] sm:$0xff]
    %v477 = vld [vmem:[%s3 + $0xb0] sm:$0xff]
    %v478 = vld [vmem:[%s3 + $0xb8] sm:$0xff]
    %v479 = vld [vmem:[%s3 + $0xc0] sm:$0xff]
    %v480 = vld [vmem:[%s3 + $0xc8] sm:$0xff]
    %v481 = vld [vmem:[%s3 + $0xd0] sm:$0xff]
    %v482 = vld [vmem:[%s3 + $0xd8] sm:$0xff]
    %v483 = vld [vmem:[%s3 + $0xe0] sm:$0xff]
    %v484 = vld [vmem:[%s3 + $0xe8] sm:$0xff]
    %v485 = vld [vmem:[%s3 + $0xf0] sm:$0xff]
    %v486 = vld [vmem:[%s3 + $0xf8] sm:$0xff]
    %v487 = vadd.f32 %v455, %v218
    %v488 = vadd.f32 %v456, %v223
    %v489 = vadd.f32 %v457, %v228
    %v490 = vadd.f32 %v458, %v233
    %v491 = vadd.f32 %v459, %v238
    %v492 = vadd.f32 %v460, %v243
    %v493 = vadd.f32 %v461, %v248
    %v494 = vadd.f32 %v462, %v253
    %v495 = vadd.f32 %v463, %v258
    %v496 = vadd.f32 %v464, %v263
    %v497 = vadd.f32 %v465, %v268
    %v498 = vadd.f32 %v466, %v273
    %v499 = vadd.f32 %v467, %v278
    %v500 = vadd.f32 %v468, %v283
    %v501 = vadd.f32 %v469, %v288
    %v502 = vadd.f32 %v470, %v293
    %v503 = vadd.f32 %v471, %v298
    %v504 = vadd.f32 %v472, %v303
    %v505 = vadd.f32 %v473, %v308
    %v506 = vadd.f32 %v474, %v313
    %v507 = vadd.f32 %v475, %v318
    %v508 = vadd.f32 %v476, %v323
    %v509 = vadd.f32 %v477, %v328
    %v510 = vadd.f32 %v478, %v333
    %v511 = vadd.f32 %v479, %v338
    %v512 = vadd.f32 %v480, %v343
    %v513 = vadd.f32 %v481, %v348
    %v514 = vadd.f32 %v482, %v353
    %v515 = vadd.f32 %v483, %v358
    %v516 = vadd.f32 %v484, %v363
    %v517 = vadd.f32 %v485, %v368
    %v518 = vadd.f32 %v486, %v373
    %519 = vst [vmem:[%s3] sm:$0xff] %v487
    %520 = vst [vmem:[%s3 + $0x8] sm:$0xff] %v488
    %521 = vst [vmem:[%s3 + $0x10] sm:$0xff] %v489
    %522 = vst [vmem:[%s3 + $0x18] sm:$0xff] %v490
    %523 = vst [vmem:[%s3 + $0x20] sm:$0xff] %v491
    %524 = vst [vmem:[%s3 + $0x28] sm:$0xff] %v492
    %525 = vst [vmem:[%s3 + $0x30] sm:$0xff] %v493
    %526 = vst [vmem:[%s3 + $0x38] sm:$0xff] %v494
    %527 = vst [vmem:[%s3 + $0x40] sm:$0xff] %v495
    %528 = vst [vmem:[%s3 + $0x48] sm:$0xff] %v496
    %529 = vst [vmem:[%s3 + $0x50] sm:$0xff] %v497
    %530 = vst [vmem:[%s3 + $0x58] sm:$0xff] %v498
    %531 = vst [vmem:[%s3 + $0x60] sm:$0xff] %v499
    %532 = vst [vmem:[%s3 + $0x68] sm:$0xff] %v500
    %533 = vst [vmem:[%s3 + $0x70] sm:$0xff] %v501
    %534 = vst [vmem:[%s3 + $0x78] sm:$0xff] %v502
    %535 = vst [vmem:[%s3 + $0x80] sm:$0xff] %v503
    %536 = vst [vmem:[%s3 + $0x88] sm:$0xff] %v504
    %537 = vst [vmem:[%s3 + $0x90] sm:$0xff] %v505
    %538 = vst [vmem:[%s3 + $0x98] sm:$0xff] %v506
    %539 = vst [vmem:[%s3 + $0xa0] sm:$0xff] %v507
    %540 = vst [vmem:[%s3 + $0xa8] sm:$0xff] %v508
    %541 = vst [vmem:[%s3 + $0xb0] sm:$0xff] %v509
    %542 = vst [vmem:[%s3 + $0xb8] sm:$0xff] %v510
    %543 = vst [vmem:[%s3 + $0xc0] sm:$0xff] %v511
    %544 = vst [vmem:[%s3 + $0xc8] sm:$0xff] %v512
    %545 = vst [vmem:[%s3 + $0xd0] sm:$0xff] %v513
    %546 = vst [vmem:[%s3 + $0xd8] sm:$0xff] %v514
    %547 = vst [vmem:[%s3 + $0xe0] sm:$0xff] %v515
    %548 = vst [vmem:[%s3 + $0xe8] sm:$0xff] %v516
    %549 = vst [vmem:[%s3 + $0xf0] sm:$0xff] %v517
    %550 = vst [vmem:[%s3 + $0xf8] sm:$0xff] %v518
  $region21: #{linear_pallas.1} parent=0 // pred_fallthru
    _
  // Predicated region
  $region22: #{linear_pallas.1} parent=0 // pred_check
    _
  $region23: #{linear_pallas.1} parent=0 // pred_check_branch
    %552 = sbr.rel (0) target = $region25
  $region24: #{linear_pallas.1} parent=0 // pred_region
    _
  $region25: #{linear_pallas.1} parent=0 // pred_fallthru
    _
  // Predicated region
  $region26: #{linear_pallas.1} parent=0 // pred_check
    _
  $region27: #{linear_pallas.1} parent=0 // pred_check_branch
    %554 = sbr.rel (0) target = $region29
  $region28: #{linear_pallas.1} parent=0 // pred_region
    _
  $region29: #{linear_pallas.1} parent=0 // pred_fallthru
    _

</llo_original>
